<compile_context>
chip_gen: v5e
topology: v5e:2x2
jax: 0.10.0
libtpu: 0.0.40
codegen_flags: <defaults>
</compile_context>

<pallas_src>
import functools

import jax
import jax.numpy as jnp
from jax.experimental import pallas as pl
from jax.experimental.pallas import tpu as pltpu

BN_EPS = 1e-5


def _tpu_vmem_bytes():
    try:
        return int(pltpu.get_tpu_info().vmem_capacity_bytes)
    except Exception:
        return 64 << 20  # conservative (v7x-sized) fallback


# --------------------------------------------------------------------------- #
# Fused path: single launch, everything resident in VMEM.
# --------------------------------------------------------------------------- #
def _fused_kernel(x_ref, w1_ref, g_ref, beta_ref, w2_ref, b2_ref, o_ref):
    x = x_ref[...].astype(jnp.bfloat16)
    h = jnp.dot(x, w1_ref[...], preferred_element_type=jnp.float32)
    mean = jnp.mean(h, axis=0, keepdims=True)
    var = jnp.maximum(jnp.mean(h * h, axis=0, keepdims=True) - mean * mean, 0.0)
    scale = g_ref[...] * jax.lax.rsqrt(var + BN_EPS)      # fused BN affine
    shift = beta_ref[...] - mean * scale
    h_act = jnp.maximum(h * scale + shift, 0.0).astype(jnp.bfloat16)
    out = jnp.dot(h_act, w2_ref[...], preferred_element_type=jnp.float32)
    o_ref[...] = (out + b2_ref[...]).astype(o_ref.dtype)


# --------------------------------------------------------------------------- #
# Tiled path, phase 1: h = x @ W1 (bf16 out), per-split partial BN statistics.
# Grid = (num_splits ["parallel" -> megacore], n_inner ["arbitrary"]).
# psum block rows: row 0 = partial sum, row 1 = partial sum of squares.
# --------------------------------------------------------------------------- #
def _stats_kernel(x_ref, w1_ref, h_ref, psum_ref):
    i = pl.program_id(1)

    @pl.when(i == 0)
    def _():
        psum_ref[...] = jnp.zeros_like(psum_ref)

    xt = x_ref[...].astype(jnp.bfloat16)
    hf = jnp.dot(xt, w1_ref[...], preferred_element_type=jnp.float32)
    h_ref[...] = hf.astype(h_ref.dtype)                   # bf16 round-trip
    psum_ref[0:1, :] += jnp.sum(hf, axis=0, keepdims=True)
    psum_ref[1:2, :] += jnp.sum(hf * hf, axis=0, keepdims=True)


# --------------------------------------------------------------------------- #
# Tiled path, phase 2: combine partial stats, BN + ReLU + Linear2 per N tile.
# --------------------------------------------------------------------------- #
def _apply_kernel(psum_ref, g_ref, beta_ref, h_ref, w2_ref, b2_ref, o_ref, *,
                  inv_n):
    num_splits = psum_ref.shape[0] // 8
    tot = psum_ref[0:8, :]
    for c in range(1, num_splits):                        # tiny static loop
        tot = tot + psum_ref[8 * c:8 * (c + 1), :]
    mean = tot[0:1, :] * inv_n
    var = jnp.maximum(tot[1:2, :] * inv_n - mean * mean, 0.0)
    scale = g_ref[...] * jax.lax.rsqrt(var + BN_EPS)
    shift = beta_ref[...] - mean * scale

    h = h_ref[...].astype(jnp.float32)
    h_act = jnp.maximum(h * scale + shift, 0.0).astype(jnp.bfloat16)
    out = jnp.dot(h_act, w2_ref[...], preferred_element_type=jnp.float32)
    o_ref[...] = (out + b2_ref[...]).astype(o_ref.dtype)


def _pick_tm(d_in, d_hid, budget):
    # Per-grid-step VMEM (double-buffered pipelined blocks; the constant-index
    # weight block is also budgeted at 2 buffers):
    #   fixed:    2 * d_in * d_hid * 2        (W1 in phase 1 / W2 in phase 2)
    #   per-row:  2 * d_in * 4 (x or y, f32) + 2 * d_hid * 2 (h, bf16)
    fixed = 2 * d_in * d_hid * 2 + (2 << 20)
    per_row = 2 * d_in * 4 + 2 * d_hid * 2
    avail = budget - fixed
    tm = avail // per_row if avail > 0 else 0
    tm = (tm // 256) * 256          # full-width MXU passes (multiple of 256/128)
    return int(min(max(tm, 256), 2048))


def _tiled_forward(x, w1_bf16, gamma, beta, w2_bf16, b2, tm, tile_budget,
                   vmem_limit):
    n, d_in = x.shape
    d_hid = w1_bf16.shape[1]

    if tm is None:
        tm = _pick_tm(d_in, d_hid, tile_budget)
    if tm >= n:
        tm = n
        n_pad = n
    else:
        n_pad = -(-n // tm) * tm
        if n_pad != n:
            # Zero rows contribute exactly 0 to sum / sum_sq (0 @ W1 = 0).
            x = jnp.pad(x, ((0, n_pad - n), (0, 0)))

    n_tiles = n_pad // tm
    num_splits = 2 if (n_tiles >= 2 and n_tiles % 2 == 0) else 1
    n_inner = n_tiles // num_splits
    inv_n = 1.0 / n                 # true batch size, not the padded one

    # ---- Phase 1: per-tile h (bf16) + per-split partial (sum, sum_sq) ----
    h_bf16, psum = pl.pallas_call(
        _stats_kernel,
        out_shape=(
            jax.ShapeDtypeStruct((n_pad, d_hid), jnp.bfloat16),
            jax.ShapeDtypeStruct((num_splits * 8, d_hid), jnp.float32),
        ),
        grid=(num_splits, n_inner),
        in_specs=[
            pl.BlockSpec((tm, d_in), lambda c, i: (c * n_inner + i, 0)),
            pl.BlockSpec((d_in, d_hid), lambda c, i: (0, 0)),   # W1 resident
        ],
        out_specs=(
            pl.BlockSpec((tm, d_hid), lambda c, i: (c * n_inner + i, 0)),
            pl.BlockSpec((8, d_hid), lambda c, i: (c, 0)),       # per-split acc
        ),
        compiler_params=pltpu.CompilerParams(
            dimension_semantics=("parallel", "arbitrary"),
            vmem_limit_bytes=vmem_limit,
        ),
    )(x, w1_bf16)

    # ---- Phase 2: combine stats, BN-apply + ReLU + Linear2 per N tile ----
    out = pl.pallas_call(
        functools.partial(_apply_kernel, inv_n=inv_n),
        out_shape=jax.ShapeDtypeStruct((n_pad, d_in), x.dtype),
        grid=(n_tiles,),
        in_specs=[
            pl.BlockSpec((num_splits * 8, d_hid), lambda i: (0, 0)),
            pl.BlockSpec((1, d_hid), lambda i: (0, 0)),          # gamma
            pl.BlockSpec((1, d_hid), lambda i: (0, 0)),          # beta
            pl.BlockSpec((tm, d_hid), lambda i: (i, 0)),         # h tile (bf16)
            pl.BlockSpec((d_hid, d_in), lambda i: (0, 0)),       # W2 resident
            pl.BlockSpec((1, d_in), lambda i: (0, 0)),           # b2
        ],
        out_specs=pl.BlockSpec((tm, d_in), lambda i: (i, 0)),
        compiler_params=pltpu.CompilerParams(
            dimension_semantics=("parallel",),
            vmem_limit_bytes=vmem_limit,
        ),
    )(psum, gamma, beta, h_bf16, w2_bf16, b2)

    return out[:n] if n_pad != n else out


def cassle_predictor(x, w1, b1, gamma, beta, w2, b2, *, tm=None,
                     force_tiled=False):
    """Forward of CaSSLe_Predictor.  x: (N, dim_in) f32 -> (N, dim_in) f32.

    b1 is accepted for parameter parity with nn.Linear but never read: the
    BatchNorm batch-mean subtraction cancels it exactly in the forward output.
    """
    del b1
    n, d_in = x.shape
    d_hid = w1.shape[1]

    # bf16 weight casts are no-ops if the caller already hoisted them.
    w1_bf16 = w1.astype(jnp.bfloat16)
    w2_bf16 = w2.astype(jnp.bfloat16)
    gamma = gamma.reshape(1, d_hid).astype(jnp.float32)
    beta = beta.reshape(1, d_hid).astype(jnp.float32)
    b2 = b2.reshape(1, d_in).astype(jnp.float32)

    vmem_cap = _tpu_vmem_bytes()                        # 64 MiB v7x, 128 v5e/v6e
    vmem_limit = int(min(vmem_cap * 0.85, vmem_cap - (2 << 20)))
    tile_budget = int(vmem_cap * 0.55)

    # Everything-resident footprint of the fused single-launch path.
    fused_bytes = (2 * n * d_in * 4            # x in + y out (f32)
                   + 2 * d_in * d_hid * 2      # W1 + W2 (bf16)
                   + 2 * n * d_hid * 4         # h + post-BN temp (f32)
                   + (2 << 20))                # params + slack
    if not force_tiled and fused_bytes <= tile_budget:
        return pl.pallas_call(
            _fused_kernel,
            out_shape=jax.ShapeDtypeStruct((n, d_in), x.dtype),
            compiler_params=pltpu.CompilerParams(vmem_limit_bytes=vmem_limit),
        )(x, w1_bf16, gamma, beta, w2_bf16, b2)

    # TODO(synk): for widths where a full (d_in, d_hid) weight block no longer
    # fits VMEM (e.g. >4k on v7x), add a K-tile grid axis instead of keeping
    # W1/W2 fully resident.
    return _tiled_forward(x, w1_bf16, gamma, beta, w2_bf16, b2,
                          tm, tile_budget, vmem_limit)


# --------------------------------------------------------------------------- #
# Parameter init + pure-JAX f32 reference (includes b1) for validation
# --------------------------------------------------------------------------- #
def init_params(key, dim_in, hidden):
    k1, k2, k3, k4, k5, k6 = jax.random.split(key, 6)
    lim1 = 1.0 / (dim_in ** 0.5)
    lim2 = 1.0 / (hidden ** 0.5)
    w1 = jax.random.uniform(k1, (dim_in, hidden), jnp.float32, -lim1, lim1)
    b1 = jax.random.uniform(k2, (1, hidden), jnp.float32, -lim1, lim1)
    gamma = 1.0 + 0.1 * jax.random.normal(k3, (1, hidden), jnp.float32)
    beta = 0.1 * jax.random.normal(k4, (1, hidden), jnp.float32)
    w2 = jax.random.uniform(k5, (hidden, dim_in), jnp.float32, -lim2, lim2)
    b2 = jax.random.uniform(k6, (1, dim_in), jnp.float32, -lim2, lim2)
    return w1, b1, gamma, beta, w2, b2


def reference(x, w1, b1, gamma, beta, w2, b2):
    h = x @ w1 + b1                                   # b1 kept on purpose:
    mean = jnp.mean(h, axis=0, keepdims=True)         # verifies it cancels in BN
    var = jnp.mean((h - mean) ** 2, axis=0, keepdims=True)
    h = (h - mean) / jnp.sqrt(var + BN_EPS) * gamma + beta
    h = jnp.maximum(h, 0.0)
    return h @ w2 + b2


if __name__ == "__main__":
    key = jax.random.PRNGKey(0)
    k1, k2, k3, k4 = jax.random.split(key, 4)

    # Case 1: tiny module-consistent shapes -> fused single-launch path.
    N, DIM_IN, HIDDEN = 8, 256, 128
    x = jax.random.normal(k1, (N, DIM_IN), jnp.float32)
    params = init_params(k2, DIM_IN, HIDDEN)
    out = jax.block_until_ready(cassle_predictor(x, *params))
    ref = reference(x, *params)
    assert out.shape == (N, DIM_IN)
    assert jnp.allclose(out, ref, atol=2e-2, rtol=2e-2), "fused path mismatch"

    # Case 2: force the two-phase tiled path (uneven batch -> zero padding,
    # 2-way core-parallel stats split, bf16 h round-trip).
    N2, DIM_IN2, HIDDEN2 = 200, 256, 256
    x2 = jax.random.normal(k3, (N2, DIM_IN2), jnp.float32)
    params2 = init_params(k4, DIM_IN2, HIDDEN2)
    out2 = jax.block_until_ready(
        cassle_predictor(x2, *params2, tm=64, force_tiled=True))
    ref2 = reference(x2, *params2)
    assert out2.shape == (N2, DIM_IN2)
    assert jnp.allclose(out2, ref2, atol=2e-2, rtol=2e-2), "tiled path mismatch"

    print("KERNEL_OK")
</pallas_src>

<mosaic_0001>
module attributes {stable_mosaic.version = 11 : i64} {
  func.func @_fused_kernel(%arg0: memref<8x256xf32, #tpu.memory_space<vmem>>, %arg1: memref<256x128xbf16, #tpu.memory_space<vmem>>, %arg2: memref<1x128xf32, #tpu.memory_space<vmem>>, %arg3: memref<1x128xf32, #tpu.memory_space<vmem>>, %arg4: memref<128x256xbf16, #tpu.memory_space<vmem>>, %arg5: memref<1x256xf32, #tpu.memory_space<vmem>>, %arg6: memref<8x256xf32, #tpu.memory_space<vmem>>) attributes {dimension_semantics = [], scalar_prefetch = 0 : i64, scratch_operands = 0 : i64, tpu.core_type = #tpu.core_type<tc>} {
    %c0 = arith.constant 0 : index
    %c0_0 = arith.constant 0 : index
    %0 = vector.load %arg0[%c0, %c0_0] : memref<8x256xf32, #tpu.memory_space<vmem>>, vector<8x256xf32>
    %1 = arith.truncf %0 : vector<8x256xf32> to vector<8x256xbf16>
    %c0_1 = arith.constant 0 : index
    %c0_2 = arith.constant 0 : index
    %2 = vector.load %arg1[%c0_1, %c0_2] : memref<256x128xbf16, #tpu.memory_space<vmem>>, vector<256x128xbf16>
    %cst = arith.constant dense<0.000000e+00> : vector<8x128xf32>
    %3 = tpu.matmul %1, %2, %cst {dimension_numbers = #tpu.dot_dimension_numbers<[1], [0], [0], [1], [0, 0, 1, 1], [], []>} : vector<8x256xbf16>, vector<256x128xbf16>, vector<8x128xf32> -> vector<8x128xf32>
    %cst_3 = arith.constant dense<0.000000e+00> : vector<128xf32>
    %4 = vector.multi_reduction <add>, %3, %cst_3 [0] : vector<8x128xf32> to vector<128xf32>
    %5 = vector.shape_cast %4 : vector<128xf32> to vector<1x128xf32>
    %cst_4 = arith.constant 8.000000e+00 : f32
    %6 = vector.broadcast %cst_4 : f32 to vector<1x128xf32>
    %7 = arith.divf %5, %6 : vector<1x128xf32>
    %8 = arith.mulf %3, %3 : vector<8x128xf32>
    %cst_5 = arith.constant dense<0.000000e+00> : vector<128xf32>
    %9 = vector.multi_reduction <add>, %8, %cst_5 [0] : vector<8x128xf32> to vector<128xf32>
    %10 = vector.shape_cast %9 : vector<128xf32> to vector<1x128xf32>
    %cst_6 = arith.constant 8.000000e+00 : f32
    %11 = vector.broadcast %cst_6 : f32 to vector<1x128xf32>
    %12 = arith.divf %10, %11 : vector<1x128xf32>
    %13 = arith.mulf %7, %7 : vector<1x128xf32>
    %14 = arith.subf %12, %13 : vector<1x128xf32>
    %cst_7 = arith.constant 0.000000e+00 : f32
    %15 = vector.broadcast %cst_7 : f32 to vector<1x128xf32>
    %16 = arith.maximumf %14, %15 : vector<1x128xf32>
    %c0_8 = arith.constant 0 : index
    %c0_9 = arith.constant 0 : index
    %17 = vector.load %arg2[%c0_8, %c0_9] : memref<1x128xf32, #tpu.memory_space<vmem>>, vector<1x128xf32>
    %cst_10 = arith.constant 9.99999974E-6 : f32
    %18 = vector.broadcast %cst_10 : f32 to vector<1x128xf32>
    %19 = arith.addf %16, %18 : vector<1x128xf32>
    %20 = math.rsqrt %19 : vector<1x128xf32>
    %21 = arith.mulf %17, %20 : vector<1x128xf32>
    %c0_11 = arith.constant 0 : index
    %c0_12 = arith.constant 0 : index
    %22 = vector.load %arg3[%c0_11, %c0_12] : memref<1x128xf32, #tpu.memory_space<vmem>>, vector<1x128xf32>
    %23 = arith.mulf %7, %21 : vector<1x128xf32>
    %24 = arith.subf %22, %23 : vector<1x128xf32>
    %25 = vector.broadcast %21 : vector<1x128xf32> to vector<8x128xf32>
    %26 = arith.mulf %3, %25 : vector<8x128xf32>
    %27 = vector.broadcast %24 : vector<1x128xf32> to vector<8x128xf32>
    %28 = arith.addf %26, %27 : vector<8x128xf32>
    %cst_13 = arith.constant 0.000000e+00 : f32
    %29 = vector.broadcast %cst_13 : f32 to vector<8x128xf32>
    %30 = arith.maximumf %28, %29 : vector<8x128xf32>
    %31 = arith.truncf %30 : vector<8x128xf32> to vector<8x128xbf16>
    %c0_14 = arith.constant 0 : index
    %c0_15 = arith.constant 0 : index
    %32 = vector.load %arg4[%c0_14, %c0_15] : memref<128x256xbf16, #tpu.memory_space<vmem>>, vector<128x256xbf16>
    %cst_16 = arith.constant dense<0.000000e+00> : vector<8x256xf32>
    %33 = tpu.matmul %31, %32, %cst_16 {dimension_numbers = #tpu.dot_dimension_numbers<[1], [0], [0], [1], [0, 0, 1, 1], [], []>} : vector<8x128xbf16>, vector<128x256xbf16>, vector<8x256xf32> -> vector<8x256xf32>
    %c0_17 = arith.constant 0 : index
    %c0_18 = arith.constant 0 : index
    %34 = vector.load %arg5[%c0_17, %c0_18] : memref<1x256xf32, #tpu.memory_space<vmem>>, vector<1x256xf32>
    %35 = vector.broadcast %34 : vector<1x256xf32> to vector<8x256xf32>
    %36 = arith.addf %33, %35 : vector<8x256xf32>
    %c0_19 = arith.constant 0 : index
    %c0_20 = arith.constant 0 : index
    %37 = vector.load %arg6[%c0_19, %c0_20] : memref<8x256xf32, #tpu.memory_space<vmem>>, vector<8x256xf32>
    tpu.vector_store %arg6[%c0_19, %c0_20], %36 {strides = array<i32>} : memref<8x256xf32, #tpu.memory_space<vmem>>, vector<8x256xf32>,
    return
  }
}

</mosaic_0001>

<llo_original>
// kernel: tpu_custom_call.1
$region0: #{tpu_custom_call.1}
  #allocation0 [shape = 'u32[]', space=smem, size = 0x4, offset = 0x4, fixed_abs, tag = 'smem constant byte address 0x4 - core index']
  #allocation1 [shape = 'u32[72,128]{1,0:T(1,128)}', space=vmem, size = 0x9000, scoped, tag = 'internal scratch']
  %s0 = inlined_call_operand.hbm [shape: f32[8,256], index: 0, kind: input, shape index: {}]
  %s1 = inlined_call_operand.hbm [shape: bf16[256,128], index: 1, kind: input, shape index: {}]
  %s2 = inlined_call_operand.vmem [shape: f32[1,128], index: 2, kind: input, shape index: {}]
  %s3 = inlined_call_operand.hbm [shape: f32[1,128], index: 3, kind: input, shape index: {}]
  %s4 = inlined_call_operand.hbm [shape: bf16[128,256], index: 4, kind: input, shape index: {}]
  %s5 = inlined_call_operand.vmem [shape: f32[1,256], index: 5, kind: input, shape index: {}]
  %s6 = inlined_call_operand.hbm [shape: f32[8,256], index: 6, kind: output, shape index: {}]
  %s7 = sld [smem:[#allocation0]]
  $region50: #{tpu_custom_call.1} parent=0
    _
  %s9 = ssub.s32 1, %s7
  %s10 = scalar_select 0, %s9, %s7
  $region1: #{tpu_custom_call.1} parent=0
    #allocation2 [shape = 'u8[8192]{0}', space=vmem, size = 0x2000, scoped, tag = 'input window, operand 0, single buffered']
    #allocation3 [shape = 's32[1]{0}', space=sflag, size = 0x4, scoped, tag = 'scoped memory for tpu_custom_call.1']
    #allocation4 [shape = 's32[1]{0}', space=sflag, size = 0x4, scoped, tag = 'scoped memory for tpu_custom_call.1']
    #allocation5 [shape = 'u8[65536]{0}', space=vmem, size = 0x10000, scoped, tag = 'input window, operand 1, single buffered']
    #allocation6 [shape = 's32[1]{0}', space=sflag, size = 0x4, scoped, tag = 'scoped memory for tpu_custom_call.1']
    #allocation7 [shape = 'u8[512]{0}', space=vmem, size = 0x400, scoped, tag = 'input window, operand 3, single buffered']
    #allocation8 [shape = 'u8[65536]{0}', space=vmem, size = 0x10000, scoped, tag = 'input window, operand 4, single buffered']
    #allocation9 [shape = 's32[1]{0}', space=sflag, size = 0x4, scoped, tag = 'scoped memory for tpu_custom_call.1']
    #allocation10 [shape = 'u8[8192]{0}', space=vmem, size = 0x2000, scoped, tag = 'output window, operand 0, single buffered']
    %11 = vsyncpa [#allocation3], 0
    %12 = vsyncpa [#allocation6], 0
    %13 = vsyncpa [#allocation9], 0
    %14 = vsyncpa [#allocation4], 0
    // Predicated region
    $region2: #{tpu_custom_call.1} parent=1 // pred_check
      _
    $region3: #{tpu_custom_call.1} parent=1 // pred_check_branch
      %16 = sbr.rel (0) target = $region5
    $region4: #{tpu_custom_call.1} parent=1 // pred_region
      %18 = vsyncadd [#allocation3], 0
      %s20 = sshll.u32 %s0, 4
      %s21 = int_to_ptr.hbm [resolvable:$true] %s20
      %s22 = sshll.u32 [#allocation2], 4
      %s23 = int_to_ptr.vmem [resolvable:$true] %s22
      %25 = dma.hbm_to_vmem [thread:$0]  %s21, 256, %s23, [#allocation3]
    $region5: #{tpu_custom_call.1} parent=1 // pred_fallthru
      _
    // Predicated region
    $region6: #{tpu_custom_call.1} parent=1 // pred_check
      _
    $region7: #{tpu_custom_call.1} parent=1 // pred_check_branch
      %27 = sbr.rel (0) target = $region9
    $region8: #{tpu_custom_call.1} parent=1 // pred_region
      %29 = vsyncadd [#allocation6], 0
      %s30 = sshll.u32 %s1, 4
      %s31 = int_to_ptr.hbm [resolvable:$true] %s30
      %s32 = sshll.u32 [#allocation5], 4
      %s33 = int_to_ptr.vmem [resolvable:$true] %s32
      %38 = dma.hbm_to_vmem [thread:$0]  %s31, 2048, %s33, [#allocation6], 64, 64, 4
    $region9: #{tpu_custom_call.1} parent=1 // pred_fallthru
      _
    // Predicated region
    $region10: #{tpu_custom_call.1} parent=1 // pred_check
      _
    $region11: #{tpu_custom_call.1} parent=1 // pred_check_branch
      %40 = sbr.rel (0) target = $region13
    $region12: #{tpu_custom_call.1} parent=1 // pred_region
      _
    $region13: #{tpu_custom_call.1} parent=1 // pred_fallthru
      _
    // Predicated region
    $region14: #{tpu_custom_call.1} parent=1 // pred_check
      _
    $region15: #{tpu_custom_call.1} parent=1 // pred_check_branch
      %42 = sbr.rel (0) target = $region17
    $region16: #{tpu_custom_call.1} parent=1 // pred_region
      %44 = vsyncadd [#allocation6], 0
      %s46 = sshll.u32 %s3, 4
      %s47 = int_to_ptr.hbm [resolvable:$true] %s46
      %s48 = sshll.u32 [#allocation7], 4
      %s49 = int_to_ptr.vmem [resolvable:$true] %s48
      %51 = dma.hbm_to_vmem [thread:$0]  %s47, 16, %s49, [#allocation6]
    $region17: #{tpu_custom_call.1} parent=1 // pred_fallthru
      _
    // Predicated region
    $region18: #{tpu_custom_call.1} parent=1 // pred_check
      _
    $region19: #{tpu_custom_call.1} parent=1 // pred_check_branch
      %53 = sbr.rel (0) target = $region21
    $region20: #{tpu_custom_call.1} parent=1 // pred_region
      %55 = vsyncadd [#allocation9], 0
      %s56 = sshll.u32 %s4, 4
      %s57 = int_to_ptr.hbm [resolvable:$true] %s56
      %s58 = sshll.u32 [#allocation8], 4
      %s59 = int_to_ptr.vmem [resolvable:$true] %s58
      %64 = dma.hbm_to_vmem [thread:$0]  %s57, 2048, %s59, [#allocation9], 128, 128, 8
    $region21: #{tpu_custom_call.1} parent=1 // pred_fallthru
      _
    // Predicated region
    $region22: #{tpu_custom_call.1} parent=1 // pred_check
      _
    $region23: #{tpu_custom_call.1} parent=1 // pred_check_branch
      %66 = sbr.rel (0) target = $region25
    $region24: #{tpu_custom_call.1} parent=1 // pred_region
      _
    $region25: #{tpu_custom_call.1} parent=1 // pred_fallthru
      _
    // Predicated region
    $region26: #{tpu_custom_call.1} parent=1 // pred_check
      _
    $region27: #{tpu_custom_call.1} parent=1 // pred_check_branch
      %68 = sbr.rel (0) target = $region29
    $region28: #{tpu_custom_call.1} parent=1 // pred_region
      %70 = dma.done [#allocation3], 256
    $region29: #{tpu_custom_call.1} parent=1 // pred_fallthru
      _
    // Predicated region
    $region30: #{tpu_custom_call.1} parent=1 // pred_check
      _
    $region31: #{tpu_custom_call.1} parent=1 // pred_check_branch
      %72 = sbr.rel (0) target = $region33
    $region32: #{tpu_custom_call.1} parent=1 // pred_region
      %74 = dma.done [#allocation6], 2048
    $region33: #{tpu_custom_call.1} parent=1 // pred_fallthru
      _
    // Predicated region
    $region34: #{tpu_custom_call.1} parent=1 // pred_check
      _
    $region35: #{tpu_custom_call.1} parent=1 // pred_check_branch
      %76 = sbr.rel (0) target = $region37
    $region36: #{tpu_custom_call.1} parent=1 // pred_region
      %78 = dma.done [#allocation6], 16
    $region37: #{tpu_custom_call.1} parent=1 // pred_fallthru
      _
    // Predicated region
    $region38: #{tpu_custom_call.1} parent=1 // pred_check
      _
    $region39: #{tpu_custom_call.1} parent=1 // pred_check_branch
      %80 = sbr.rel (0) target = $region41
    $region40: #{tpu_custom_call.1} parent=1 // pred_region
      %82 = dma.done [#allocation9], 2048
    $region41: #{tpu_custom_call.1} parent=1 // pred_fallthru
      _
    %v83 = vld [vmem:[#allocation2] sm:$0xff]
    %v84 = vld [vmem:[#allocation2 + $0x8] sm:$0xff]
    %v85 = vpack.c.bf16 %v83, %v83
    %v86 = vpack.c.bf16 %v84, %v84
    %v87 = vld [vmem:[#allocation5] sm:$0xf]
    %v88 = vld [vmem:[#allocation5 + $0x4] sm:$0xf]
    %v89 = vld [vmem:[#allocation5 + $0x8] sm:$0xf]
    %v90 = vld [vmem:[#allocation5 + $0xc] sm:$0xf]
    %v91 = vld [vmem:[#allocation5 + $0x10] sm:$0xf]
    %v92 = vld [vmem:[#allocation5 + $0x14] sm:$0xf]
    %v93 = vld [vmem:[#allocation5 + $0x18] sm:$0xf]
    %v94 = vld [vmem:[#allocation5 + $0x1c] sm:$0xf]
    %v95 = vld [vmem:[#allocation5 + $0x20] sm:$0xf]
    %v96 = vld [vmem:[#allocation5 + $0x24] sm:$0xf]
    %v97 = vld [vmem:[#allocation5 + $0x28] sm:$0xf]
    %v98 = vld [vmem:[#allocation5 + $0x2c] sm:$0xf]
    %v99 = vld [vmem:[#allocation5 + $0x30] sm:$0xf]
    %v100 = vld [vmem:[#allocation5 + $0x34] sm:$0xf]
    %v101 = vld [vmem:[#allocation5 + $0x38] sm:$0xf]
    %v102 = vld [vmem:[#allocation5 + $0x3c] sm:$0xf]
    %v103 = vld [vmem:[#allocation5 + $0x40] sm:$0xf]
    %v104 = vld [vmem:[#allocation5 + $0x44] sm:$0xf]
    %v105 = vld [vmem:[#allocation5 + $0x48] sm:$0xf]
    %v106 = vld [vmem:[#allocation5 + $0x4c] sm:$0xf]
    %v107 = vld [vmem:[#allocation5 + $0x50] sm:$0xf]
    %v108 = vld [vmem:[#allocation5 + $0x54] sm:$0xf]
    %v109 = vld [vmem:[#allocation5 + $0x58] sm:$0xf]
    %v110 = vld [vmem:[#allocation5 + $0x5c] sm:$0xf]
    %v111 = vld [vmem:[#allocation5 + $0x60] sm:$0xf]
    %v112 = vld [vmem:[#allocation5 + $0x64] sm:$0xf]
    %v113 = vld [vmem:[#allocation5 + $0x68] sm:$0xf]
    %v114 = vld [vmem:[#allocation5 + $0x6c] sm:$0xf]
    %v115 = vld [vmem:[#allocation5 + $0x70] sm:$0xf]
    %v116 = vld [vmem:[#allocation5 + $0x74] sm:$0xf]
    %v117 = vld [vmem:[#allocation5 + $0x78] sm:$0xf]
    %v118 = vld [vmem:[#allocation5 + $0x7c] sm:$0xf]
    %v151 = vunpack.c.l.b16 %v87
    %v152 = vunpack.c.l.b16 %v88
    %v153 = vunpack.c.l.b16 %v89
    %v154 = vunpack.c.l.b16 %v90
    %v155 = vunpack.c.l.b16 %v91
    %v156 = vunpack.c.l.b16 %v92
    %v157 = vunpack.c.l.b16 %v93
    %v158 = vunpack.c.l.b16 %v94
    %v159 = vunpack.c.l.b16 %v95
    %v160 = vunpack.c.l.b16 %v96
    %v161 = vunpack.c.l.b16 %v97
    %v162 = vunpack.c.l.b16 %v98
    %v163 = vunpack.c.l.b16 %v99
    %v164 = vunpack.c.l.b16 %v100
    %v165 = vunpack.c.l.b16 %v101
    %v166 = vunpack.c.l.b16 %v102
    %v167 = vunpack.c.l.b16 %v103
    %v168 = vunpack.c.l.b16 %v104
    %v169 = vunpack.c.l.b16 %v105
    %v170 = vunpack.c.l.b16 %v106
    %v171 = vunpack.c.l.b16 %v107
    %v172 = vunpack.c.l.b16 %v108
    %v173 = vunpack.c.l.b16 %v109
    %v174 = vunpack.c.l.b16 %v110
    %v175 = vunpack.c.l.b16 %v111
    %v176 = vunpack.c.l.b16 %v112
    %v177 = vunpack.c.l.b16 %v113
    %v178 = vunpack.c.l.b16 %v114
    %v179 = vunpack.c.l.b16 %v115
    %v180 = vunpack.c.l.b16 %v116
    %v181 = vunpack.c.l.b16 %v117
    %v182 = vunpack.c.l.b16 %v118
    %v183 = vpack.c.b16 %v152, %v151
    %v184 = vpack.c.b16 %v154, %v153
    %v185 = vpack.c.b16 %v156, %v155
    %v186 = vpack.c.b16 %v158, %v157
    %v187 = vpack.c.b16 %v160, %v159
    %v188 = vpack.c.b16 %v162, %v161
    %v189 = vpack.c.b16 %v164, %v163
    %v190 = vpack.c.b16 %v166, %v165
    %v191 = vpack.c.b16 %v168, %v167
    %v192 = vpack.c.b16 %v170, %v169
    %v193 = vpack.c.b16 %v172, %v171
    %v194 = vpack.c.b16 %v174, %v173
    %v195 = vpack.c.b16 %v176, %v175
    %v196 = vpack.c.b16 %v178, %v177
    %v197 = vpack.c.b16 %v180, %v179
    %v198 = vpack.c.b16 %v182, %v181
    %215 = vmatpush.bf16.msra.mxu0 %v190
    %216 = vmatpush.bf16.msra.mxu0 %v189
    %217 = vmatpush.bf16.msra.mxu0 %v188
    %218 = vmatpush.bf16.msra.mxu0 %v187
    %219 = vmatpush.bf16.msra.mxu0 %v186
    %220 = vmatpush.bf16.msra.mxu0 %v185
    %221 = vmatpush.bf16.msra.mxu0 %v184
    %222 = vmatpush.bf16.msra.mxu0 %v183
    %223 = vmatmul.bf16.gmra.mxu0 %v85
    %v224 = vpop.f32.mrf.mxu0
    %v225 = vadd.f32 0.0, %v224
    %v226 = vpop.f32.mrf.mxu0
    %227 = vdwg.mxu0
    %228 = vmatpush.bf16.msra.mxu0 %v198
    %229 = vmatpush.bf16.msra.mxu0 %v197
    %230 = vmatpush.bf16.msra.mxu0 %v196
    %231 = vmatpush.bf16.msra.mxu0 %v195
    %232 = vmatpush.bf16.msra.mxu0 %v194
    %233 = vmatpush.bf16.msra.mxu0 %v193
    %234 = vmatpush.bf16.msra.mxu0 %v192
    %235 = vmatpush.bf16.msra.mxu0 %v191
    %236 = vmatmul.bf16.gmra.mxu0 %v86
    %v237 = vpop.f32.mrf.mxu0
    %v238 = vadd.f32 %v225, %v237
    %v239 = vpop.f32.mrf.mxu0
    %240 = vdwg.mxu0
    %v241 = vrot.slane %v238, 4
    %v242 = vadd.f32 %v238, %v241
    %v243 = vrot.slane %v242, 2
    %v244 = vadd.f32 %v242, %v243
    %v245 = vrot.slane %v244, 1
    %v246 = vadd.f32 %v244, %v245
    %v247 = vrcp.pop 8.0
    %v248 = vmul.f32 8.0, %v247
    %v249 = vsub.f32 1.0, %v248
    %v250 = vmul.f32 %v247, %v249
    %v251 = vadd.f32 %v247, %v250
    %vm252 = vweird.f32 %v247
    %v253 = vsel %vm252, %v247, %v251
    %v254 = vmul.f32 %v246, %v253
    %v255 = vmul.f32 %v238, %v238
    %v256 = vrot.slane %v255, 4
    %v257 = vadd.f32 %v255, %v256
    %v258 = vrot.slane %v257, 2
    %v259 = vadd.f32 %v257, %v258
    %v260 = vrot.slane %v259, 1
    %v261 = vadd.f32 %v259, %v260
    %v262 = vmul.f32 %v261, %v253
    %v263 = vmul.f32 %v254, %v254
    %v264 = vsub.f32 %v262, %v263
    %v265 = vmax.f32 %v264, 0.0
    %v266 = vld [vmem:[%s2] sm:$0x1]
    %v267 = vadd.f32 %v265, 1e-05
    %v268 = vrsqrt.pop %v267
    %v269 = vmul.f32 %v268, %v267
    %v270 = vmul.f32 %v269, %v268
    %v271 = vmul.f32 0.5, %v270
    %v272 = vsub.f32 1.5, %v271
    %v273 = vmul.f32 %v268, %v272
    %vm274 = vweird.f32 %v267
    %vm275 = vweird.f32 %v268
    %vm276 = vmor %vm274, %vm275
    %v277 = vsel %vm276, %v268, %v273
    %v278 = vmul.f32 %v266, %v277
    %v279 = vld [vmem:[#allocation7] sm:$0x1]
    %v280 = vmul.f32 %v254, %v278
    %v281 = vsub.f32 %v279, %v280
    %v283 = vperm.slane %v278, 0
    %v285 = vmul.f32 %v238, %v283
    %v287 = vperm.slane %v281, 0
    %v289 = vadd.f32 %v285, %v287
    %v290 = vmax.f32 %v289, 0.0
    %v291 = vpack.c.bf16 %v290, %v290
    %v292 = vld [vmem:[#allocation8] sm:$0xff]
    %v293 = vld [vmem:[#allocation8 + $0x8] sm:$0xff]
    %v294 = vld [vmem:[#allocation8 + $0x10] sm:$0xff]
    %v295 = vld [vmem:[#allocation8 + $0x18] sm:$0xff]
    %v296 = vld [vmem:[#allocation8 + $0x20] sm:$0xff]
    %v297 = vld [vmem:[#allocation8 + $0x28] sm:$0xff]
    %v298 = vld [vmem:[#allocation8 + $0x30] sm:$0xff]
    %v299 = vld [vmem:[#allocation8 + $0x38] sm:$0xff]
    %v300 = vld [vmem:[#allocation8 + $0x40] sm:$0xff]
    %v301 = vld [vmem:[#allocation8 + $0x48] sm:$0xff]
    %v302 = vld [vmem:[#allocation8 + $0x50] sm:$0xff]
    %v303 = vld [vmem:[#allocation8 + $0x58] sm:$0xff]
    %v304 = vld [vmem:[#allocation8 + $0x60] sm:$0xff]
    %v305 = vld [vmem:[#allocation8 + $0x68] sm:$0xff]
    %v306 = vld [vmem:[#allocation8 + $0x70] sm:$0xff]
    %v307 = vld [vmem:[#allocation8 + $0x78] sm:$0xff]
    %v308 = vld [vmem:[%s5] sm:$0x3]
    %v310 = vperm.slane %v308, 0
    %v311 = vperm.slane %v308, 1
    %v330 = vunpack.c.l.b16 %v292
    %v331 = vunpack.c.h.b16 %v292
    %v332 = vunpack.c.l.b16 %v293
    %v333 = vunpack.c.h.b16 %v293
    %v334 = vunpack.c.l.b16 %v294
    %v335 = vunpack.c.h.b16 %v294
    %v336 = vunpack.c.l.b16 %v295
    %v337 = vunpack.c.h.b16 %v295
    %v338 = vunpack.c.l.b16 %v296
    %v339 = vunpack.c.h.b16 %v296
    %v340 = vunpack.c.l.b16 %v297
    %v341 = vunpack.c.h.b16 %v297
    %v342 = vunpack.c.l.b16 %v298
    %v343 = vunpack.c.h.b16 %v298
    %v344 = vunpack.c.l.b16 %v299
    %v345 = vunpack.c.h.b16 %v299
    %v346 = vunpack.c.l.b16 %v300
    %v347 = vunpack.c.h.b16 %v300
    %v348 = vunpack.c.l.b16 %v301
    %v349 = vunpack.c.h.b16 %v301
    %v350 = vunpack.c.l.b16 %v302
    %v351 = vunpack.c.h.b16 %v302
    %v352 = vunpack.c.l.b16 %v303
    %v353 = vunpack.c.h.b16 %v303
    %v354 = vunpack.c.l.b16 %v304
    %v355 = vunpack.c.h.b16 %v304
    %v356 = vunpack.c.l.b16 %v305
    %v357 = vunpack.c.h.b16 %v305
    %v358 = vunpack.c.l.b16 %v306
    %v359 = vunpack.c.h.b16 %v306
    %v360 = vunpack.c.l.b16 %v307
    %v361 = vunpack.c.h.b16 %v307
    %v362 = vpack.c.b16 %v332, %v330
    %v363 = vpack.c.b16 %v333, %v331
    %v364 = vpack.c.b16 %v336, %v334
    %v365 = vpack.c.b16 %v337, %v335
    %v366 = vpack.c.b16 %v340, %v338
    %v367 = vpack.c.b16 %v341, %v339
    %v368 = vpack.c.b16 %v344, %v342
    %v369 = vpack.c.b16 %v345, %v343
    %v370 = vpack.c.b16 %v348, %v346
    %v371 = vpack.c.b16 %v349, %v347
    %v372 = vpack.c.b16 %v352, %v350
    %v373 = vpack.c.b16 %v353, %v351
    %v374 = vpack.c.b16 %v356, %v354
    %v375 = vpack.c.b16 %v357, %v355
    %v376 = vpack.c.b16 %v360, %v358
    %v377 = vpack.c.b16 %v361, %v359
    %394 = vmatpush.bf16.msra.mxu0 %v376
    %395 = vmatpush.bf16.msra.mxu0 %v374
    %396 = vmatpush.bf16.msra.mxu0 %v372
    %397 = vmatpush.bf16.msra.mxu0 %v370
    %398 = vmatpush.bf16.msra.mxu0 %v368
    %399 = vmatpush.bf16.msra.mxu0 %v366
    %400 = vmatpush.bf16.msra.mxu0 %v364
    %401 = vmatpush.bf16.msra.mxu0 %v362
    %402 = vmatmul.bf16.gmra.mxu0 %v291
    %v403 = vpop.f32.mrf.mxu0
    %v404 = vadd.f32 %v310, %v403
    %v405 = vpop.f32.mrf.mxu0
    %406 = vdwg.mxu0
    %407 = vmatpush.bf16.msra.mxu0 %v377
    %408 = vmatpush.bf16.msra.mxu0 %v375
    %409 = vmatpush.bf16.msra.mxu0 %v373
    %410 = vmatpush.bf16.msra.mxu0 %v371
    %411 = vmatpush.bf16.msra.mxu0 %v369
    %412 = vmatpush.bf16.msra.mxu0 %v367
    %413 = vmatpush.bf16.msra.mxu0 %v365
    %414 = vmatpush.bf16.msra.mxu0 %v363
    %415 = vmatmul.bf16.gmra.mxu0 %v291
    %v416 = vpop.f32.mrf.mxu0
    %v417 = vadd.f32 %v311, %v416
    %v418 = vpop.f32.mrf.mxu0
    %419 = vdwg.mxu0
    %420 = vst [vmem:[#allocation10] sm:$0xff] %v404
    %421 = vst [vmem:[#allocation10 + $0x8] sm:$0xff] %v417
    // Predicated region
    $region42: #{tpu_custom_call.1} parent=1 // pred_check
      _
    $region43: #{tpu_custom_call.1} parent=1 // pred_check_branch
      %423 = sbr.rel (0) target = $region45
    $region44: #{tpu_custom_call.1} parent=1 // pred_region
      %425 = vsyncadd [#allocation4], 0
      %s427 = sshll.u32 [#allocation10], 4
      %s428 = int_to_ptr.vmem [resolvable:$true] %s427
      %s429 = sshll.u32 %s6, 4
      %s430 = int_to_ptr.hbm [resolvable:$true] %s429
      %432 = dma.vmem_to_hbm [thread:$0]  %s428, 256, %s430, [#allocation4]
    $region45: #{tpu_custom_call.1} parent=1 // pred_fallthru
      _
    // Predicated region
    $region46: #{tpu_custom_call.1} parent=1 // pred_check
      _
    $region47: #{tpu_custom_call.1} parent=1 // pred_check_branch
      %434 = sbr.rel (0) target = $region49
    $region48: #{tpu_custom_call.1} parent=1 // pred_region
      %436 = dma.done [#allocation4], 256
    $region49: #{tpu_custom_call.1} parent=1 // pred_fallthru
      _
    %437 = vsyncpa [#allocation3], 1
    %438 = vsyncpa [#allocation6], 1
    %439 = vsyncpa [#allocation9], 1
    %440 = vsyncpa [#allocation4], 1

</llo_original>
